<compile_context>
chip_gen: v6e
topology: v6e:2x2x1
jax: 0.10.0
libtpu: 0.0.40
codegen_flags: <defaults>
</compile_context>

<pallas_src>
import jax
import jax.numpy as jnp
from jax.experimental import pallas as pl
from jax.experimental.pallas import tpu as pltpu


LATENT_PAD = 128  # lane-dense padded width for mean / log_std / samples


def _round_up(x, m):
    return ((x + m - 1) // m) * m


def _vae_kernel(x_ref, noise_ref,
                ew1_ref, eb1_ref, ew2_ref, eb2_ref,
                dw1_ref, db1_ref, dw2_ref, db2_ref,
                recon_ref, enc_ref, samp_ref):
    # ----- encoder: tanh(x @ W1 + b1) @ W2 + b2 (W2/b2 lane-padded) -----
    # bf16 operands into the MXU, f32 accumulation, f32 bias/activation math.
    x_bf = x_ref[...].astype(jnp.bfloat16)
    h = jnp.dot(x_bf, ew1_ref[...], preferred_element_type=jnp.float32)
    h = jnp.tanh(h + eb1_ref[...])                        # bias (1, hidden) broadcasts
    enc = jnp.dot(h.astype(jnp.bfloat16), ew2_ref[...],
                  preferred_element_type=jnp.float32) + eb2_ref[...]
    enc_ref[...] = enc                                    # (TB, 2*LP): [mean_pad | log_std_pad]

    # ----- reparameterization (elementwise on 128-wide lane-aligned slabs) -----
    lp = samp_ref.shape[1]
    mean_pad = enc[:, :lp]
    log_std_pad = enc[:, lp:]
    # Pad lanes are exactly 0: noise pad = 0, mean/log_std pad = 0 -> 0*exp(0)+0.
    # (Decoder fc1's zero pad rows would mask them anyway.)
    samples = noise_ref[...] * jnp.exp(log_std_pad) + mean_pad
    samp_ref[...] = samples

    # ----- decoder: sigmoid(tanh(z @ W1 + b1) @ W2 + b2) -----
    hd = jnp.dot(samples.astype(jnp.bfloat16), dw1_ref[...],
                 preferred_element_type=jnp.float32)
    hd = jnp.tanh(hd + db1_ref[...])
    logits = jnp.dot(hd.astype(jnp.bfloat16), dw2_ref[...],
                     preferred_element_type=jnp.float32) + db2_ref[...]
    # Exact sigmoid via tanh: runs in the EUP slot instead of a VALU divide.
    recon_ref[...] = 0.5 * (jnp.tanh(0.5 * logits) + 1.0)


def prepare_vae_params(params, latent_dim):
    """One-time (load-time) weight prep, hoisted out of the per-call path:
    pad the narrow latent dims to lane-dense widths and pre-cast matmul weights
    to bf16 (MXU-native).  Biases stay f32 (added to the f32 accumulator)."""
    ew1, eb1, ew2, eb2, dw1, db1, dw2, db2 = params
    hidden = ew1.shape[1]
    lp = LATENT_PAD
    L = latent_dim
    f32, bf16 = jnp.float32, jnp.bfloat16

    # Encoder fc2: (hidden, 2L) -> (hidden, 2*LP), mean / log_std in two
    # separate 128-wide lane-aligned slabs; pad columns are zero.
    ew2_p = jnp.zeros((hidden, 2 * lp), f32)
    ew2_p = ew2_p.at[:, :L].set(ew2[:, :L]).at[:, lp:lp + L].set(ew2[:, L:])
    eb2_p = jnp.zeros((1, 2 * lp), f32)
    eb2_p = eb2_p.at[:, :L].set(eb2[:, :L]).at[:, lp:lp + L].set(eb2[:, L:])
    # Decoder fc1: (L, hidden) -> (LP, hidden); zero pad rows neutralize pad lanes.
    dw1_p = jnp.zeros((lp, hidden), f32).at[:L, :].set(dw1)

    return (ew1.astype(bf16), eb1.astype(f32),
            ew2_p.astype(bf16), eb2_p.astype(f32),
            dw1_p.astype(bf16), db1.astype(f32),
            dw2.astype(bf16), db2.astype(f32))


def handwriting_vae_forward(image, noise, prepped_params, latent_dim, slen, *, tb=512):
    """image: (B, 1, slen, slen) f32; noise: (B, latent_dim) standard normal.
    prepped_params: output of prepare_vae_params (padded + bf16 weights).
    Returns (recon_mean, latent_mean, latent_log_std, latent_samples)."""
    ew1, eb1, ew2_p, eb2_p, dw1_p, db1, dw2, db2 = prepped_params
    n_pixels = slen * slen
    hidden = ew1.shape[1]
    lp = LATENT_PAD

    x = image.reshape(-1, n_pixels).astype(jnp.float32)
    b = x.shape[0]

    # --- batch tiling: TB rows per grid step, weights resident across steps ---
    tb = max(8, _round_up(tb, 8))            # (8,128) rule: sublane dim multiple of 8
    tb = min(tb, _round_up(b, 8))            # never bigger than the (padded) batch
    if b > 8 and _round_up(b, tb) // tb < 2:
        # v7x: give the "parallel" batch axis >= 2 grid steps so both TCs get work.
        tb = _round_up((b + 1) // 2, 8)
    b_pad = _round_up(b, tb)
    grid = (b_pad // tb,)

    # --- per-call activation padding only (weights were padded at load time) ---
    if b_pad != b:
        x = jnp.pad(x, ((0, b_pad - b), (0, 0)))
    noise_p = jnp.pad(noise.astype(jnp.float32),
                      ((0, b_pad - b), (0, lp - latent_dim)))

    recon, enc_out, samp = pl.pallas_call(
        _vae_kernel,
        out_shape=(
            jax.ShapeDtypeStruct((b_pad, n_pixels), jnp.float32),
            jax.ShapeDtypeStruct((b_pad, 2 * lp), jnp.float32),
            jax.ShapeDtypeStruct((b_pad, lp), jnp.float32),
        ),
        grid=grid,
        in_specs=[
            pl.BlockSpec((tb, n_pixels), lambda i: (i, 0)),       # x tile
            pl.BlockSpec((tb, lp), lambda i: (i, 0)),             # noise tile
            pl.BlockSpec((n_pixels, hidden), lambda i: (0, 0)),   # enc W1 (bf16, resident)
            pl.BlockSpec((1, hidden), lambda i: (0, 0)),          # enc b1
            pl.BlockSpec((hidden, 2 * lp), lambda i: (0, 0)),     # enc W2 (bf16, padded)
            pl.BlockSpec((1, 2 * lp), lambda i: (0, 0)),          # enc b2 (padded)
            pl.BlockSpec((lp, hidden), lambda i: (0, 0)),         # dec W1 (bf16, padded)
            pl.BlockSpec((1, hidden), lambda i: (0, 0)),          # dec b1
            pl.BlockSpec((hidden, n_pixels), lambda i: (0, 0)),   # dec W2 (bf16)
            pl.BlockSpec((1, n_pixels), lambda i: (0, 0)),        # dec b2
        ],
        out_specs=(
            pl.BlockSpec((tb, n_pixels), lambda i: (i, 0)),       # recon (lane-dense)
            pl.BlockSpec((tb, 2 * lp), lambda i: (i, 0)),         # [mean|log_std] padded
            pl.BlockSpec((tb, lp), lambda i: (i, 0)),             # samples padded
        ),
        compiler_params=pltpu.CompilerParams(
            dimension_semantics=("parallel",)),                   # v7x: both TCs
    )(x, noise_p, ew1, eb1, ew2_p, eb2_p, dw1_p, db1, dw2, db2)

    latent_mean = enc_out[:b, :latent_dim]
    latent_log_std = enc_out[:b, lp:lp + latent_dim]
    latent_samples = samp[:b, :latent_dim]
    recon_mean = recon[:b].reshape(-1, 1, slen, slen)
    return recon_mean, latent_mean, latent_log_std, latent_samples


def init_params(key, n_pixels, hidden, latent_dim):
    """Deterministic synthetic params (nn.Linear shapes, stored transposed: x @ W + b)."""
    ks = jax.random.split(key, 8)

    def lin(kw, kb, fan_in, fan_out):
        s = 1.0 / jnp.sqrt(jnp.float32(fan_in))
        w = jax.random.uniform(kw, (fan_in, fan_out), jnp.float32, -s, s)
        b_ = jax.random.uniform(kb, (1, fan_out), jnp.float32, -s, s)
        return w, b_

    ew1, eb1 = lin(ks[0], ks[1], n_pixels, hidden)          # encoder fc1
    ew2, eb2 = lin(ks[2], ks[3], hidden, 2 * latent_dim)    # encoder fc2
    dw1, db1 = lin(ks[4], ks[5], latent_dim, hidden)        # decoder fc1
    dw2, db2 = lin(ks[6], ks[7], hidden, n_pixels)          # decoder fc2
    return (ew1, eb1, ew2, eb2, dw1, db1, dw2, db2)


if __name__ == "__main__":
    latent_dim = 5
    slen = 16
    n_pixels = slen * slen
    hidden = 256
    batch = 8

    key = jax.random.PRNGKey(0)
    k_img, k_par, k_noise = jax.random.split(key, 3)
    image = jax.random.normal(k_img, (batch, 1, slen, slen), dtype=jnp.float32)
    params = init_params(k_par, n_pixels, hidden, latent_dim)
    noise = jax.random.normal(k_noise, (batch, latent_dim), dtype=jnp.float32)

    prepped = prepare_vae_params(params, latent_dim)        # one-time weight prep
    recon_mean, latent_mean, latent_log_std, latent_samples = handwriting_vae_forward(
        image, noise, prepped, latent_dim, slen)
    jax.block_until_ready((recon_mean, latent_mean, latent_log_std, latent_samples))

    # ----- pure-JAX reference with matching bf16 matmul inputs / f32 accumulation -----
    ew1, eb1, ew2, eb2, dw1, db1, dw2, db2 = params
    bf16 = jnp.bfloat16
    x_flat = image.reshape(-1, n_pixels)
    h_ref = jnp.tanh(jnp.dot(x_flat.astype(bf16), ew1.astype(bf16),
                             preferred_element_type=jnp.float32) + eb1)
    enc_ref = jnp.dot(h_ref.astype(bf16), ew2.astype(bf16),
                      preferred_element_type=jnp.float32) + eb2
    ref_mean = enc_ref[:, :latent_dim]
    ref_log_std = enc_ref[:, latent_dim:2 * latent_dim]
    ref_samples = noise * jnp.exp(ref_log_std) + ref_mean
    hd_ref = jnp.tanh(jnp.dot(ref_samples.astype(bf16), dw1.astype(bf16),
                              preferred_element_type=jnp.float32) + db1)
    ref_logits = jnp.dot(hd_ref.astype(bf16), dw2.astype(bf16),
                         preferred_element_type=jnp.float32) + db2
    ref_recon = (0.5 * (jnp.tanh(0.5 * ref_logits) + 1.0)).reshape(-1, 1, slen, slen)

    # ----- full-f32 reference (original module math) for a looser sanity check -----
    h32 = jnp.tanh(x_flat @ ew1 + eb1)
    enc32 = h32 @ ew2 + eb2
    mean32 = enc32[:, :latent_dim]
    logstd32 = enc32[:, latent_dim:2 * latent_dim]
    samp32 = noise * jnp.exp(logstd32) + mean32
    recon32 = jax.nn.sigmoid(jnp.tanh(samp32 @ dw1 + db1) @ dw2 + db2).reshape(-1, 1, slen, slen)

    assert recon_mean.shape == (batch, 1, slen, slen)
    assert latent_mean.shape == (batch, latent_dim)
    assert latent_log_std.shape == (batch, latent_dim)
    assert latent_samples.shape == (batch, latent_dim)
    # Tight check against the bf16-matched reference.
    assert jnp.allclose(latent_mean, ref_mean, atol=2e-3, rtol=2e-3)
    assert jnp.allclose(latent_log_std, ref_log_std, atol=2e-3, rtol=2e-3)
    assert jnp.allclose(latent_samples, ref_samples, atol=2e-3, rtol=2e-3)
    assert jnp.allclose(recon_mean, ref_recon, atol=2e-3, rtol=2e-3)
    # Loose check against the exact f32 module math (bf16 input rounding only).
    assert jnp.allclose(latent_mean, mean32, atol=3e-2, rtol=3e-2)
    assert jnp.allclose(recon_mean, recon32, atol=3e-2, rtol=3e-2)

    print("KERNEL_OK")
</pallas_src>

<mosaic_0001>
module attributes {stable_mosaic.version = 11 : i64} {
  func.func @_vae_kernel(%arg0: i32, %arg1: memref<8x256xf32, #tpu.memory_space<vmem>>, %arg2: memref<8x128xf32, #tpu.memory_space<vmem>>, %arg3: memref<256x256xbf16, #tpu.memory_space<vmem>>, %arg4: memref<1x256xf32, #tpu.memory_space<vmem>>, %arg5: memref<256x256xbf16, #tpu.memory_space<vmem>>, %arg6: memref<1x256xf32, #tpu.memory_space<vmem>>, %arg7: memref<128x256xbf16, #tpu.memory_space<vmem>>, %arg8: memref<1x256xf32, #tpu.memory_space<vmem>>, %arg9: memref<256x256xbf16, #tpu.memory_space<vmem>>, %arg10: memref<1x256xf32, #tpu.memory_space<vmem>>, %arg11: memref<8x256xf32, #tpu.memory_space<vmem>>, %arg12: memref<8x256xf32, #tpu.memory_space<vmem>>, %arg13: memref<8x128xf32, #tpu.memory_space<vmem>>) attributes {dimension_semantics = [#tpu.dimension_semantics<parallel>], iteration_bounds = array<i64: 1>, scalar_prefetch = 0 : i64, scratch_operands = 0 : i64, tpu.core_type = #tpu.core_type<tc>, window_params = [{transform_indices = @transform_0, window_bounds = array<i64: 8, 256>}, {transform_indices = @transform_1, window_bounds = array<i64: 8, 128>}, {pipeline_mode = #tpu.pipeline_mode<synchronous>, transform_indices = @transform_2, window_bounds = array<i64: 256, 256>}, {pipeline_mode = #tpu.pipeline_mode<synchronous>, transform_indices = @transform_3, window_bounds = array<i64: 1, 256>}, {pipeline_mode = #tpu.pipeline_mode<synchronous>, transform_indices = @transform_4, window_bounds = array<i64: 256, 256>}, {pipeline_mode = #tpu.pipeline_mode<synchronous>, transform_indices = @transform_5, window_bounds = array<i64: 1, 256>}, {pipeline_mode = #tpu.pipeline_mode<synchronous>, transform_indices = @transform_6, window_bounds = array<i64: 128, 256>}, {pipeline_mode = #tpu.pipeline_mode<synchronous>, transform_indices = @transform_7, window_bounds = array<i64: 1, 256>}, {pipeline_mode = #tpu.pipeline_mode<synchronous>, transform_indices = @transform_8, window_bounds = array<i64: 256, 256>}, {pipeline_mode = #tpu.pipeline_mode<synchronous>, transform_indices = @transform_9, window_bounds = array<i64: 1, 256>}, {transform_indices = @transform_10, window_bounds = array<i64: 8, 256>}, {transform_indices = @transform_11, window_bounds = array<i64: 8, 256>}, {transform_indices = @transform_12, window_bounds = array<i64: 8, 128>}]} {
    %c0 = arith.constant 0 : index
    %c0_0 = arith.constant 0 : index
    %0 = vector.load %arg1[%c0, %c0_0] : memref<8x256xf32, #tpu.memory_space<vmem>>, vector<8x256xf32>
    %1 = arith.truncf %0 : vector<8x256xf32> to vector<8x256xbf16>
    %c0_1 = arith.constant 0 : index
    %c0_2 = arith.constant 0 : index
    %2 = vector.load %arg3[%c0_1, %c0_2] : memref<256x256xbf16, #tpu.memory_space<vmem>>, vector<256x256xbf16>
    %cst = arith.constant dense<0.000000e+00> : vector<8x256xf32>
    %3 = tpu.matmul %1, %2, %cst {dimension_numbers = #tpu.dot_dimension_numbers<[1], [0], [0], [1], [0, 0, 1, 1], [], []>} : vector<8x256xbf16>, vector<256x256xbf16>, vector<8x256xf32> -> vector<8x256xf32>
    %c0_3 = arith.constant 0 : index
    %c0_4 = arith.constant 0 : index
    %4 = vector.load %arg4[%c0_3, %c0_4] : memref<1x256xf32, #tpu.memory_space<vmem>>, vector<1x256xf32>
    %5 = vector.broadcast %4 : vector<1x256xf32> to vector<8x256xf32>
    %6 = arith.addf %3, %5 : vector<8x256xf32>
    %7 = math.tanh %6 : vector<8x256xf32>
    %8 = arith.truncf %7 : vector<8x256xf32> to vector<8x256xbf16>
    %c0_5 = arith.constant 0 : index
    %c0_6 = arith.constant 0 : index
    %9 = vector.load %arg5[%c0_5, %c0_6] : memref<256x256xbf16, #tpu.memory_space<vmem>>, vector<256x256xbf16>
    %cst_7 = arith.constant dense<0.000000e+00> : vector<8x256xf32>
    %10 = tpu.matmul %8, %9, %cst_7 {dimension_numbers = #tpu.dot_dimension_numbers<[1], [0], [0], [1], [0, 0, 1, 1], [], []>} : vector<8x256xbf16>, vector<256x256xbf16>, vector<8x256xf32> -> vector<8x256xf32>
    %c0_8 = arith.constant 0 : index
    %c0_9 = arith.constant 0 : index
    %11 = vector.load %arg6[%c0_8, %c0_9] : memref<1x256xf32, #tpu.memory_space<vmem>>, vector<1x256xf32>
    %12 = vector.broadcast %11 : vector<1x256xf32> to vector<8x256xf32>
    %13 = arith.addf %10, %12 : vector<8x256xf32>
    %c0_10 = arith.constant 0 : index
    %c0_11 = arith.constant 0 : index
    %14 = vector.load %arg12[%c0_10, %c0_11] : memref<8x256xf32, #tpu.memory_space<vmem>>, vector<8x256xf32>
    tpu.vector_store %arg12[%c0_10, %c0_11], %13 {strides = array<i32>} : memref<8x256xf32, #tpu.memory_space<vmem>>, vector<8x256xf32>,
    %15 = vector.extract_strided_slice %13 {offsets = [0, 0], sizes = [8, 128], strides = [1, 1]} : vector<8x256xf32> to vector<8x128xf32>
    %16 = vector.extract_strided_slice %13 {offsets = [0, 128], sizes = [8, 128], strides = [1, 1]} : vector<8x256xf32> to vector<8x128xf32>
    %c0_12 = arith.constant 0 : index
    %c0_13 = arith.constant 0 : index
    %17 = vector.load %arg2[%c0_12, %c0_13] : memref<8x128xf32, #tpu.memory_space<vmem>>, vector<8x128xf32>
    %18 = math.exp %16 : vector<8x128xf32>
    %19 = arith.mulf %17, %18 : vector<8x128xf32>
    %20 = arith.addf %19, %15 : vector<8x128xf32>
    %c0_14 = arith.constant 0 : index
    %c0_15 = arith.constant 0 : index
    %21 = vector.load %arg13[%c0_14, %c0_15] : memref<8x128xf32, #tpu.memory_space<vmem>>, vector<8x128xf32>
    tpu.vector_store %arg13[%c0_14, %c0_15], %20 {strides = array<i32>} : memref<8x128xf32, #tpu.memory_space<vmem>>, vector<8x128xf32>,
    %22 = arith.truncf %20 : vector<8x128xf32> to vector<8x128xbf16>
    %c0_16 = arith.constant 0 : index
    %c0_17 = arith.constant 0 : index
    %23 = vector.load %arg7[%c0_16, %c0_17] : memref<128x256xbf16, #tpu.memory_space<vmem>>, vector<128x256xbf16>
    %cst_18 = arith.constant dense<0.000000e+00> : vector<8x256xf32>
    %24 = tpu.matmul %22, %23, %cst_18 {dimension_numbers = #tpu.dot_dimension_numbers<[1], [0], [0], [1], [0, 0, 1, 1], [], []>} : vector<8x128xbf16>, vector<128x256xbf16>, vector<8x256xf32> -> vector<8x256xf32>
    %c0_19 = arith.constant 0 : index
    %c0_20 = arith.constant 0 : index
    %25 = vector.load %arg8[%c0_19, %c0_20] : memref<1x256xf32, #tpu.memory_space<vmem>>, vector<1x256xf32>
    %26 = vector.broadcast %25 : vector<1x256xf32> to vector<8x256xf32>
    %27 = arith.addf %24, %26 : vector<8x256xf32>
    %28 = math.tanh %27 : vector<8x256xf32>
    %29 = arith.truncf %28 : vector<8x256xf32> to vector<8x256xbf16>
    %c0_21 = arith.constant 0 : index
    %c0_22 = arith.constant 0 : index
    %30 = vector.load %arg9[%c0_21, %c0_22] : memref<256x256xbf16, #tpu.memory_space<vmem>>, vector<256x256xbf16>
    %cst_23 = arith.constant dense<0.000000e+00> : vector<8x256xf32>
    %31 = tpu.matmul %29, %30, %cst_23 {dimension_numbers = #tpu.dot_dimension_numbers<[1], [0], [0], [1], [0, 0, 1, 1], [], []>} : vector<8x256xbf16>, vector<256x256xbf16>, vector<8x256xf32> -> vector<8x256xf32>
    %c0_24 = arith.constant 0 : index
    %c0_25 = arith.constant 0 : index
    %32 = vector.load %arg10[%c0_24, %c0_25] : memref<1x256xf32, #tpu.memory_space<vmem>>, vector<1x256xf32>
    %33 = vector.broadcast %32 : vector<1x256xf32> to vector<8x256xf32>
    %34 = arith.addf %31, %33 : vector<8x256xf32>
    %cst_26 = arith.constant 5.000000e-01 : f32
    %35 = vector.broadcast %cst_26 : f32 to vector<8x256xf32>
    %36 = arith.mulf %35, %34 : vector<8x256xf32>
    %37 = math.tanh %36 : vector<8x256xf32>
    %cst_27 = arith.constant 1.000000e+00 : f32
    %38 = vector.broadcast %cst_27 : f32 to vector<8x256xf32>
    %39 = arith.addf %37, %38 : vector<8x256xf32>
    %cst_28 = arith.constant 5.000000e-01 : f32
    %40 = vector.broadcast %cst_28 : f32 to vector<8x256xf32>
    %41 = arith.mulf %40, %39 : vector<8x256xf32>
    %c0_29 = arith.constant 0 : index
    %c0_30 = arith.constant 0 : index
    %42 = vector.load %arg11[%c0_29, %c0_30] : memref<8x256xf32, #tpu.memory_space<vmem>>, vector<8x256xf32>
    tpu.vector_store %arg11[%c0_29, %c0_30], %41 {strides = array<i32>} : memref<8x256xf32, #tpu.memory_space<vmem>>, vector<8x256xf32>,
    return
  }
  func.func @transform_0(%arg0: i32) -> (i32, i32) {
    %c0_i32 = arith.constant 0 : i32
    %c0_i32_0 = arith.constant 0 : i32
    return %arg0, %c0_i32 : i32, i32
  }
  func.func @transform_1(%arg0: i32) -> (i32, i32) {
    %c0_i32 = arith.constant 0 : i32
    %c0_i32_0 = arith.constant 0 : i32
    return %arg0, %c0_i32 : i32, i32
  }
  func.func @transform_2(%arg0: i32) -> (i32, i32) {
    %c0_i32 = arith.constant 0 : i32
    %c0_i32_0 = arith.constant 0 : i32
    %c0_i32_1 = arith.constant 0 : i32
    return %c0_i32, %c0_i32_0 : i32, i32
  }
  func.func @transform_3(%arg0: i32) -> (i32, i32) {
    %c0_i32 = arith.constant 0 : i32
    %c0_i32_0 = arith.constant 0 : i32
    %c0_i32_1 = arith.constant 0 : i32
    return %c0_i32, %c0_i32_0 : i32, i32
  }
  func.func @transform_4(%arg0: i32) -> (i32, i32) {
    %c0_i32 = arith.constant 0 : i32
    %c0_i32_0 = arith.constant 0 : i32
    %c0_i32_1 = arith.constant 0 : i32
    return %c0_i32, %c0_i32_0 : i32, i32
  }
  func.func @transform_5(%arg0: i32) -> (i32, i32) {
    %c0_i32 = arith.constant 0 : i32
    %c0_i32_0 = arith.constant 0 : i32
    %c0_i32_1 = arith.constant 0 : i32
    return %c0_i32, %c0_i32_0 : i32, i32
  }
  func.func @transform_6(%arg0: i32) -> (i32, i32) {
    %c0_i32 = arith.constant 0 : i32
    %c0_i32_0 = arith.constant 0 : i32
    %c0_i32_1 = arith.constant 0 : i32
    return %c0_i32, %c0_i32_0 : i32, i32
  }
  func.func @transform_7(%arg0: i32) -> (i32, i32) {
    %c0_i32 = arith.constant 0 : i32
    %c0_i32_0 = arith.constant 0 : i32
    %c0_i32_1 = arith.constant 0 : i32
    return %c0_i32, %c0_i32_0 : i32, i32
  }
  func.func @transform_8(%arg0: i32) -> (i32, i32) {
    %c0_i32 = arith.constant 0 : i32
    %c0_i32_0 = arith.constant 0 : i32
    %c0_i32_1 = arith.constant 0 : i32
    return %c0_i32, %c0_i32_0 : i32, i32
  }
  func.func @transform_9(%arg0: i32) -> (i32, i32) {
    %c0_i32 = arith.constant 0 : i32
    %c0_i32_0 = arith.constant 0 : i32
    %c0_i32_1 = arith.constant 0 : i32
    return %c0_i32, %c0_i32_0 : i32, i32
  }
  func.func @transform_10(%arg0: i32) -> (i32, i32) {
    %c0_i32 = arith.constant 0 : i32
    %c0_i32_0 = arith.constant 0 : i32
    return %arg0, %c0_i32 : i32, i32
  }
  func.func @transform_11(%arg0: i32) -> (i32, i32) {
    %c0_i32 = arith.constant 0 : i32
    %c0_i32_0 = arith.constant 0 : i32
    return %arg0, %c0_i32 : i32, i32
  }
  func.func @transform_12(%arg0: i32) -> (i32, i32) {
    %c0_i32 = arith.constant 0 : i32
    %c0_i32_0 = arith.constant 0 : i32
    return %arg0, %c0_i32 : i32, i32
  }
}

</mosaic_0001>

<llo_original>
// kernel: tpu_custom_call.1
$region0: #{tpu_custom_call.1}
  #allocation0 [shape = 'u32[]', space=smem, size = 0x4, offset = 0x4, fixed_abs, tag = 'smem constant byte address 0x4 - core index']
  #allocation1 [shape = 'u32[144,128]{1,0:T(1,128)}', space=vmem, size = 0x12000, scoped, tag = 'internal scratch']
  %s0 = inlined_call_operand.hbm [shape: f32[8,256], index: 0, kind: input, shape index: {}]
  %s1 = inlined_call_operand.hbm [shape: f32[8,128], index: 1, kind: input, shape index: {}]
  %s2 = inlined_call_operand.hbm [shape: bf16[256,256], index: 2, kind: input, shape index: {}]
  %s3 = inlined_call_operand.vmem [shape: f32[1,256], index: 3, kind: input, shape index: {}]
  %s4 = inlined_call_operand.hbm [shape: bf16[256,256], index: 4, kind: input, shape index: {}]
  %s5 = inlined_call_operand.vmem [shape: f32[1,256], index: 5, kind: input, shape index: {}]
  %s6 = inlined_call_operand.hbm [shape: bf16[128,256], index: 6, kind: input, shape index: {}]
  %s7 = inlined_call_operand.vmem [shape: f32[1,256], index: 7, kind: input, shape index: {}]
  %s8 = inlined_call_operand.hbm [shape: bf16[256,256], index: 8, kind: input, shape index: {}]
  %s9 = inlined_call_operand.vmem [shape: f32[1,256], index: 9, kind: input, shape index: {}]
  %s10 = inlined_call_operand.hbm [shape: f32[8,256], index: 10, kind: output, shape index: {0}]
  %s11 = inlined_call_operand.hbm [shape: f32[8,256], index: 11, kind: output, shape index: {1}]
  %s12 = inlined_call_operand.hbm [shape: f32[8,128], index: 12, kind: output, shape index: {2}]
  %13 = xla_tuple %s10, %s11, %s12
  %s14 = sld [smem:[#allocation0]]
  $region90: #{tpu_custom_call.1} parent=0
    _
  %s16 = ssub.s32 1, %s14
  %s17 = scalar_select 0, %s16, %s14
  $region1: #{tpu_custom_call.1} parent=0
    #allocation2 [shape = 'u8[8192]{0}', space=vmem, size = 0x2000, scoped, tag = 'input window, operand 0, single buffered']
    #allocation3 [shape = 's32[1]{0}', space=sflag, size = 0x4, scoped, tag = 'scoped memory for tpu_custom_call.1']
    #allocation4 [shape = 's32[1]{0}', space=sflag, size = 0x4, scoped, tag = 'scoped memory for tpu_custom_call.1']
    #allocation5 [shape = 'u8[4096]{0}', space=vmem, size = 0x1000, scoped, tag = 'input window, operand 1, single buffered']
    #allocation6 [shape = 's32[1]{0}', space=sflag, size = 0x4, scoped, tag = 'scoped memory for tpu_custom_call.1']
    #allocation7 [shape = 'u8[131072]{0}', space=vmem, size = 0x20000, scoped, tag = 'input window, operand 2, single buffered']
    #allocation8 [shape = 'u8[131072]{0}', space=vmem, size = 0x20000, scoped, tag = 'input window, operand 4, single buffered']
    #allocation9 [shape = 's32[1]{0}', space=sflag, size = 0x4, scoped, tag = 'scoped memory for tpu_custom_call.1']
    #allocation10 [shape = 'u8[65536]{0}', space=vmem, size = 0x10000, scoped, tag = 'input window, operand 6, single buffered']
    #allocation11 [shape = 'u8[131072]{0}', space=vmem, size = 0x20000, scoped, tag = 'input window, operand 8, single buffered']
    #allocation12 [shape = 's32[1]{0}', space=sflag, size = 0x4, scoped, tag = 'scoped memory for tpu_custom_call.1']
    #allocation13 [shape = 'u8[8192]{0}', space=vmem, size = 0x2000, scoped, tag = 'output window, operand 0, single buffered']
    #allocation14 [shape = 'u8[8192]{0}', space=vmem, size = 0x2000, scoped, tag = 'output window, operand 1, single buffered']
    #allocation15 [shape = 's32[1]{0}', space=sflag, size = 0x4, scoped, tag = 'scoped memory for tpu_custom_call.1']
    #allocation16 [shape = 'u8[4096]{0}', space=vmem, size = 0x1000, scoped, tag = 'output window, operand 2, single buffered']
    %18 = vsyncpa [#allocation3], 0
    %19 = vsyncpa [#allocation6], 0
    %20 = vsyncpa [#allocation9], 0
    %21 = vsyncpa [#allocation12], 0
    %22 = vsyncpa [#allocation4], 0
    %23 = vsyncpa [#allocation15], 0
    // Predicated region
    $region2: #{tpu_custom_call.1} parent=1 // pred_check
      _
    $region3: #{tpu_custom_call.1} parent=1 // pred_check_branch
      %25 = sbr.rel (0) target = $region5
    $region4: #{tpu_custom_call.1} parent=1 // pred_region
      %s27 = ssub.s32 256, 256
      %28 = vsyncadd [#allocation3], %s27
      %s30 = sshll.u32 [#allocation2], 4
      %s31 = int_to_ptr.vmem [resolvable:$true] %s30
      %33 = dma.hbm_to_vmem [thread:$0]  %s0, 256, %s31, [#allocation3]
    $region5: #{tpu_custom_call.1} parent=1 // pred_fallthru
      _
    // Predicated region
    $region6: #{tpu_custom_call.1} parent=1 // pred_check
      _
    $region7: #{tpu_custom_call.1} parent=1 // pred_check_branch
      %35 = sbr.rel (0) target = $region9
    $region8: #{tpu_custom_call.1} parent=1 // pred_region
      %s37 = ssub.s32 128, 128
      %38 = vsyncadd [#allocation6], %s37
      %s40 = sshll.u32 [#allocation5], 4
      %s41 = int_to_ptr.vmem [resolvable:$true] %s40
      %43 = dma.hbm_to_vmem [thread:$0]  %s1, 128, %s41, [#allocation6]
    $region9: #{tpu_custom_call.1} parent=1 // pred_fallthru
      _
    // Predicated region
    $region10: #{tpu_custom_call.1} parent=1 // pred_check
      _
    $region11: #{tpu_custom_call.1} parent=1 // pred_check_branch
      %45 = sbr.rel (0) target = $region13
    $region12: #{tpu_custom_call.1} parent=1 // pred_region
      %s47 = ssub.s32 4096, 4096
      %48 = vsyncadd [#allocation6], %s47
      %s49 = sshll.u32 [#allocation7], 4
      %s50 = int_to_ptr.vmem [resolvable:$true] %s49
      %55 = dma.hbm_to_vmem [thread:$0]  %s2, 4096, %s50, [#allocation6], 128, 128, 8
    $region13: #{tpu_custom_call.1} parent=1 // pred_fallthru
      _
    // Predicated region
    $region14: #{tpu_custom_call.1} parent=1 // pred_check
      _
    $region15: #{tpu_custom_call.1} parent=1 // pred_check_branch
      %57 = sbr.rel (0) target = $region17
    $region16: #{tpu_custom_call.1} parent=1 // pred_region
      _
    $region17: #{tpu_custom_call.1} parent=1 // pred_fallthru
      _
    // Predicated region
    $region18: #{tpu_custom_call.1} parent=1 // pred_check
      _
    $region19: #{tpu_custom_call.1} parent=1 // pred_check_branch
      %59 = sbr.rel (0) target = $region21
    $region20: #{tpu_custom_call.1} parent=1 // pred_region
      %s61 = ssub.s32 4096, 4096
      %62 = vsyncadd [#allocation9], %s61
      %s63 = sshll.u32 [#allocation8], 4
      %s64 = int_to_ptr.vmem [resolvable:$true] %s63
      %69 = dma.hbm_to_vmem [thread:$0]  %s4, 4096, %s64, [#allocation9], 128, 128, 8
    $region21: #{tpu_custom_call.1} parent=1 // pred_fallthru
      _
    // Predicated region
    $region22: #{tpu_custom_call.1} parent=1 // pred_check
      _
    $region23: #{tpu_custom_call.1} parent=1 // pred_check_branch
      %71 = sbr.rel (0) target = $region25
    $region24: #{tpu_custom_call.1} parent=1 // pred_region
      _
    $region25: #{tpu_custom_call.1} parent=1 // pred_fallthru
      _
    // Predicated region
    $region26: #{tpu_custom_call.1} parent=1 // pred_check
      _
    $region27: #{tpu_custom_call.1} parent=1 // pred_check_branch
      %73 = sbr.rel (0) target = $region29
    $region28: #{tpu_custom_call.1} parent=1 // pred_region
      %s75 = ssub.s32 2048, 2048
      %76 = vsyncadd [#allocation9], %s75
      %s77 = sshll.u32 [#allocation10], 4
      %s78 = int_to_ptr.vmem [resolvable:$true] %s77
      %83 = dma.hbm_to_vmem [thread:$0]  %s6, 2048, %s78, [#allocation9], 128, 128, 8
    $region29: #{tpu_custom_call.1} parent=1 // pred_fallthru
      _
    // Predicated region
    $region30: #{tpu_custom_call.1} parent=1 // pred_check
      _
    $region31: #{tpu_custom_call.1} parent=1 // pred_check_branch
      %85 = sbr.rel (0) target = $region33
    $region32: #{tpu_custom_call.1} parent=1 // pred_region
      _
    $region33: #{tpu_custom_call.1} parent=1 // pred_fallthru
      _
    // Predicated region
    $region34: #{tpu_custom_call.1} parent=1 // pred_check
      _
    $region35: #{tpu_custom_call.1} parent=1 // pred_check_branch
      %87 = sbr.rel (0) target = $region37
    $region36: #{tpu_custom_call.1} parent=1 // pred_region
      %s89 = ssub.s32 4096, 4096
      %90 = vsyncadd [#allocation12], %s89
      %s91 = sshll.u32 [#allocation11], 4
      %s92 = int_to_ptr.vmem [resolvable:$true] %s91
      %97 = dma.hbm_to_vmem [thread:$0]  %s8, 4096, %s92, [#allocation12], 128, 128, 8
    $region37: #{tpu_custom_call.1} parent=1 // pred_fallthru
      _
    // Predicated region
    $region38: #{tpu_custom_call.1} parent=1 // pred_check
      _
    $region39: #{tpu_custom_call.1} parent=1 // pred_check_branch
      %99 = sbr.rel (0) target = $region41
    $region40: #{tpu_custom_call.1} parent=1 // pred_region
      _
    $region41: #{tpu_custom_call.1} parent=1 // pred_fallthru
      _
    // Predicated region
    $region42: #{tpu_custom_call.1} parent=1 // pred_check
      _
    $region43: #{tpu_custom_call.1} parent=1 // pred_check_branch
      %101 = sbr.rel (0) target = $region45
    $region44: #{tpu_custom_call.1} parent=1 // pred_region
      %102 = dma.done [#allocation3], 256
    $region45: #{tpu_custom_call.1} parent=1 // pred_fallthru
      _
    // Predicated region
    $region46: #{tpu_custom_call.1} parent=1 // pred_check
      _
    $region47: #{tpu_custom_call.1} parent=1 // pred_check_branch
      %104 = sbr.rel (0) target = $region49
    $region48: #{tpu_custom_call.1} parent=1 // pred_region
      %105 = dma.done [#allocation6], 128
    $region49: #{tpu_custom_call.1} parent=1 // pred_fallthru
      _
    // Predicated region
    $region50: #{tpu_custom_call.1} parent=1 // pred_check
      _
    $region51: #{tpu_custom_call.1} parent=1 // pred_check_branch
      %107 = sbr.rel (0) target = $region53
    $region52: #{tpu_custom_call.1} parent=1 // pred_region
      %108 = dma.done [#allocation6], 4096
    $region53: #{tpu_custom_call.1} parent=1 // pred_fallthru
      _
    // Predicated region
    $region54: #{tpu_custom_call.1} parent=1 // pred_check
      _
    $region55: #{tpu_custom_call.1} parent=1 // pred_check_branch
      %110 = sbr.rel (0) target = $region57
    $region56: #{tpu_custom_call.1} parent=1 // pred_region
      %111 = dma.done [#allocation9], 4096
    $region57: #{tpu_custom_call.1} parent=1 // pred_fallthru
      _
    // Predicated region
    $region58: #{tpu_custom_call.1} parent=1 // pred_check
      _
    $region59: #{tpu_custom_call.1} parent=1 // pred_check_branch
      %113 = sbr.rel (0) target = $region61
    $region60: #{tpu_custom_call.1} parent=1 // pred_region
      %114 = dma.done [#allocation9], 2048
    $region61: #{tpu_custom_call.1} parent=1 // pred_fallthru
      _
    // Predicated region
    $region62: #{tpu_custom_call.1} parent=1 // pred_check
      _
    $region63: #{tpu_custom_call.1} parent=1 // pred_check_branch
      %116 = sbr.rel (0) target = $region65
    $region64: #{tpu_custom_call.1} parent=1 // pred_region
      %117 = dma.done [#allocation12], 4096
    $region65: #{tpu_custom_call.1} parent=1 // pred_fallthru
      _
    %v119 = vld [vmem:[#allocation2] sm:$0xff]
    %v120 = vld [vmem:[#allocation2 + $0x8] sm:$0xff]
    %v121 = vpack.c.bf16 %v119, %v119
    %v122 = vpack.c.bf16 %v120, %v120
    %v123 = vld [vmem:[#allocation7] sm:$0xff]
    %v124 = vld [vmem:[#allocation7 + $0x8] sm:$0xff]
    %v125 = vld [vmem:[#allocation7 + $0x10] sm:$0xff]
    %v126 = vld [vmem:[#allocation7 + $0x18] sm:$0xff]
    %v127 = vld [vmem:[#allocation7 + $0x20] sm:$0xff]
    %v128 = vld [vmem:[#allocation7 + $0x28] sm:$0xff]
    %v129 = vld [vmem:[#allocation7 + $0x30] sm:$0xff]
    %v130 = vld [vmem:[#allocation7 + $0x38] sm:$0xff]
    %v131 = vld [vmem:[#allocation7 + $0x40] sm:$0xff]
    %v132 = vld [vmem:[#allocation7 + $0x48] sm:$0xff]
    %v133 = vld [vmem:[#allocation7 + $0x50] sm:$0xff]
    %v134 = vld [vmem:[#allocation7 + $0x58] sm:$0xff]
    %v135 = vld [vmem:[#allocation7 + $0x60] sm:$0xff]
    %v136 = vld [vmem:[#allocation7 + $0x68] sm:$0xff]
    %v137 = vld [vmem:[#allocation7 + $0x70] sm:$0xff]
    %v138 = vld [vmem:[#allocation7 + $0x78] sm:$0xff]
    %v139 = vld [vmem:[#allocation7 + $0x80] sm:$0xff]
    %v140 = vld [vmem:[#allocation7 + $0x88] sm:$0xff]
    %v141 = vld [vmem:[#allocation7 + $0x90] sm:$0xff]
    %v142 = vld [vmem:[#allocation7 + $0x98] sm:$0xff]
    %v143 = vld [vmem:[#allocation7 + $0xa0] sm:$0xff]
    %v144 = vld [vmem:[#allocation7 + $0xa8] sm:$0xff]
    %v145 = vld [vmem:[#allocation7 + $0xb0] sm:$0xff]
    %v146 = vld [vmem:[#allocation7 + $0xb8] sm:$0xff]
    %v147 = vld [vmem:[#allocation7 + $0xc0] sm:$0xff]
    %v148 = vld [vmem:[#allocation7 + $0xc8] sm:$0xff]
    %v149 = vld [vmem:[#allocation7 + $0xd0] sm:$0xff]
    %v150 = vld [vmem:[#allocation7 + $0xd8] sm:$0xff]
    %v151 = vld [vmem:[#allocation7 + $0xe0] sm:$0xff]
    %v152 = vld [vmem:[#allocation7 + $0xe8] sm:$0xff]
    %v153 = vld [vmem:[#allocation7 + $0xf0] sm:$0xff]
    %v154 = vld [vmem:[#allocation7 + $0xf8] sm:$0xff]
    %v155 = vld [vmem:[%s3] sm:$0x3]
    %v157 = vlaneseq
    %v158 = vshrl.u32 %v157, 7
    %v159 = vsub.s32 0, %v158
    %v160 = vrot.slane %v155, %v159
    %v161 = vlaneseq
    %v162 = vshrl.u32 %v161, 7
    %v163 = vsub.s32 1, %v162
    %v164 = vrot.slane %v155, %v163
    %v199 = vunpack.c.l.b16 %v123
    %v200 = vunpack.c.h.b16 %v123
    %v201 = vunpack.c.l.b16 %v124
    %v202 = vunpack.c.h.b16 %v124
    %v203 = vunpack.c.l.b16 %v125
    %v204 = vunpack.c.h.b16 %v125
    %v205 = vunpack.c.l.b16 %v126
    %v206 = vunpack.c.h.b16 %v126
    %v207 = vunpack.c.l.b16 %v127
    %v208 = vunpack.c.h.b16 %v127
    %v209 = vunpack.c.l.b16 %v128
    %v210 = vunpack.c.h.b16 %v128
    %v211 = vunpack.c.l.b16 %v129
    %v212 = vunpack.c.h.b16 %v129
    %v213 = vunpack.c.l.b16 %v130
    %v214 = vunpack.c.h.b16 %v130
    %v215 = vunpack.c.l.b16 %v131
    %v216 = vunpack.c.h.b16 %v131
    %v217 = vunpack.c.l.b16 %v132
    %v218 = vunpack.c.h.b16 %v132
    %v219 = vunpack.c.l.b16 %v133
    %v220 = vunpack.c.h.b16 %v133
    %v221 = vunpack.c.l.b16 %v134
    %v222 = vunpack.c.h.b16 %v134
    %v223 = vunpack.c.l.b16 %v135
    %v224 = vunpack.c.h.b16 %v135
    %v225 = vunpack.c.l.b16 %v136
    %v226 = vunpack.c.h.b16 %v136
    %v227 = vunpack.c.l.b16 %v137
    %v228 = vunpack.c.h.b16 %v137
    %v229 = vunpack.c.l.b16 %v138
    %v230 = vunpack.c.h.b16 %v138
    %v231 = vunpack.c.l.b16 %v139
    %v232 = vunpack.c.h.b16 %v139
    %v233 = vunpack.c.l.b16 %v140
    %v234 = vunpack.c.h.b16 %v140
    %v235 = vunpack.c.l.b16 %v141
    %v236 = vunpack.c.h.b16 %v141
    %v237 = vunpack.c.l.b16 %v142
    %v238 = vunpack.c.h.b16 %v142
    %v239 = vunpack.c.l.b16 %v143
    %v240 = vunpack.c.h.b16 %v143
    %v241 = vunpack.c.l.b16 %v144
    %v242 = vunpack.c.h.b16 %v144
    %v243 = vunpack.c.l.b16 %v145
    %v244 = vunpack.c.h.b16 %v145
    %v245 = vunpack.c.l.b16 %v146
    %v246 = vunpack.c.h.b16 %v146
    %v247 = vunpack.c.l.b16 %v147
    %v248 = vunpack.c.h.b16 %v147
    %v249 = vunpack.c.l.b16 %v148
    %v250 = vunpack.c.h.b16 %v148
    %v251 = vunpack.c.l.b16 %v149
    %v252 = vunpack.c.h.b16 %v149
    %v253 = vunpack.c.l.b16 %v150
    %v254 = vunpack.c.h.b16 %v150
    %v255 = vunpack.c.l.b16 %v151
    %v256 = vunpack.c.h.b16 %v151
    %v257 = vunpack.c.l.b16 %v152
    %v258 = vunpack.c.h.b16 %v152
    %v259 = vunpack.c.l.b16 %v153
    %v260 = vunpack.c.h.b16 %v153
    %v261 = vunpack.c.l.b16 %v154
    %v262 = vunpack.c.h.b16 %v154
    %v263 = vpack.c.b16 %v201, %v199
    %v264 = vpack.c.b16 %v202, %v200
    %v265 = vpack.c.b16 %v205, %v203
    %v266 = vpack.c.b16 %v206, %v204
    %v267 = vpack.c.b16 %v209, %v207
    %v268 = vpack.c.b16 %v210, %v208
    %v269 = vpack.c.b16 %v213, %v211
    %v270 = vpack.c.b16 %v214, %v212
    %v271 = vpack.c.b16 %v217, %v215
    %v272 = vpack.c.b16 %v218, %v216
    %v273 = vpack.c.b16 %v221, %v219
    %v274 = vpack.c.b16 %v222, %v220
    %v275 = vpack.c.b16 %v225, %v223
    %v276 = vpack.c.b16 %v226, %v224
    %v277 = vpack.c.b16 %v229, %v227
    %v278 = vpack.c.b16 %v230, %v228
    %v279 = vpack.c.b16 %v233, %v231
    %v280 = vpack.c.b16 %v234, %v232
    %v281 = vpack.c.b16 %v237, %v235
    %v282 = vpack.c.b16 %v238, %v236
    %v283 = vpack.c.b16 %v241, %v239
    %v284 = vpack.c.b16 %v242, %v240
    %v285 = vpack.c.b16 %v245, %v243
    %v286 = vpack.c.b16 %v246, %v244
    %v287 = vpack.c.b16 %v249, %v247
    %v288 = vpack.c.b16 %v250, %v248
    %v289 = vpack.c.b16 %v253, %v251
    %v290 = vpack.c.b16 %v254, %v252
    %v291 = vpack.c.b16 %v257, %v255
    %v292 = vpack.c.b16 %v258, %v256
    %v293 = vpack.c.b16 %v261, %v259
    %v294 = vpack.c.b16 %v262, %v260
    %327 = vmatprep.subr.bf16.mxu0 %v278
    %328 = vmatpush1.bf16.msra.mxu0 %v277
    %329 = vmatprep.subr.bf16.mxu0 %v276
    %330 = vmatpush1.bf16.msra.mxu0 %v275
    %331 = vmatprep.subr.bf16.mxu0 %v274
    %332 = vmatpush1.bf16.msra.mxu0 %v273
    %333 = vmatprep.subr.bf16.mxu0 %v272
    %334 = vmatpush1.bf16.msra.mxu0 %v271
    %335 = vmatprep.subr.bf16.mxu0 %v270
    %336 = vmatpush1.bf16.msra.mxu0 %v269
    %337 = vmatprep.subr.bf16.mxu0 %v268
    %338 = vmatpush1.bf16.msra.mxu0 %v267
    %339 = vmatprep.subr.bf16.mxu0 %v266
    %340 = vmatpush1.bf16.msra.mxu0 %v265
    %341 = vmatprep.subr.bf16.mxu0 %v264
    %342 = vmatpush1.bf16.msra.mxu0 %v263
    %343 = vmatprep.subr.bf16.mxu0 %v294
    %344 = vmatpush2.bf16.msra.mxu0 %v293
    %345 = vmatprep.subr.bf16.mxu0 %v292
    %346 = vmatpush2.bf16.msra.mxu0 %v291
    %347 = vmatprep.subr.bf16.mxu0 %v290
    %348 = vmatpush2.bf16.msra.mxu0 %v289
    %349 = vmatprep.subr.bf16.mxu0 %v288
    %350 = vmatpush2.bf16.msra.mxu0 %v287
    %351 = vmatprep.subr.bf16.mxu0 %v286
    %352 = vmatpush2.bf16.msra.mxu0 %v285
    %353 = vmatprep.subr.bf16.mxu0 %v284
    %354 = vmatpush2.bf16.msra.mxu0 %v283
    %355 = vmatprep.subr.bf16.mxu0 %v282
    %356 = vmatpush2.bf16.msra.mxu0 %v281
    %357 = vmatprep.subr.bf16.mxu0 %v280
    %358 = vmatpush2.bf16.msra.mxu0 %v279
    %359 = vmatprep.mubr.bf16.mxu0 %v122
    %360 = vmatmul.mubr.bf16.gmra.mxu0 %v121
    %v361 = vpop.f32.mrf.mxu0
    %v362 = vadd.f32 %v160, %v361
    %v363 = vpop.f32.mrf.mxu0
    %v364 = vadd.f32 %v164, %v363
    %v365 = vpop.f32.mrf.mxu0
    %v366 = vpop.f32.mrf.mxu0
    %367 = vdwg.mxu0
    %v368 = vtanh.pop %v362
    %v369 = vtanh.pop %v364
    %v370 = vpack.c.bf16 %v368, %v368
    %v371 = vpack.c.bf16 %v369, %v369
    %v372 = vld [vmem:[#allocation8] sm:$0xff]
    %v373 = vld [vmem:[#allocation8 + $0x8] sm:$0xff]
    %v374 = vld [vmem:[#allocation8 + $0x10] sm:$0xff]
    %v375 = vld [vmem:[#allocation8 + $0x18] sm:$0xff]
    %v376 = vld [vmem:[#allocation8 + $0x20] sm:$0xff]
    %v377 = vld [vmem:[#allocation8 + $0x28] sm:$0xff]
    %v378 = vld [vmem:[#allocation8 + $0x30] sm:$0xff]
    %v379 = vld [vmem:[#allocation8 + $0x38] sm:$0xff]
    %v380 = vld [vmem:[#allocation8 + $0x40] sm:$0xff]
    %v381 = vld [vmem:[#allocation8 + $0x48] sm:$0xff]
    %v382 = vld [vmem:[#allocation8 + $0x50] sm:$0xff]
    %v383 = vld [vmem:[#allocation8 + $0x58] sm:$0xff]
    %v384 = vld [vmem:[#allocation8 + $0x60] sm:$0xff]
    %v385 = vld [vmem:[#allocation8 + $0x68] sm:$0xff]
    %v386 = vld [vmem:[#allocation8 + $0x70] sm:$0xff]
    %v387 = vld [vmem:[#allocation8 + $0x78] sm:$0xff]
    %v388 = vld [vmem:[#allocation8 + $0x80] sm:$0xff]
    %v389 = vld [vmem:[#allocation8 + $0x88] sm:$0xff]
    %v390 = vld [vmem:[#allocation8 + $0x90] sm:$0xff]
    %v391 = vld [vmem:[#allocation8 + $0x98] sm:$0xff]
    %v392 = vld [vmem:[#allocation8 + $0xa0] sm:$0xff]
    %v393 = vld [vmem:[#allocation8 + $0xa8] sm:$0xff]
    %v394 = vld [vmem:[#allocation8 + $0xb0] sm:$0xff]
    %v395 = vld [vmem:[#allocation8 + $0xb8] sm:$0xff]
    %v396 = vld [vmem:[#allocation8 + $0xc0] sm:$0xff]
    %v397 = vld [vmem:[#allocation8 + $0xc8] sm:$0xff]
    %v398 = vld [vmem:[#allocation8 + $0xd0] sm:$0xff]
    %v399 = vld [vmem:[#allocation8 + $0xd8] sm:$0xff]
    %v400 = vld [vmem:[#allocation8 + $0xe0] sm:$0xff]
    %v401 = vld [vmem:[#allocation8 + $0xe8] sm:$0xff]
    %v402 = vld [vmem:[#allocation8 + $0xf0] sm:$0xff]
    %v403 = vld [vmem:[#allocation8 + $0xf8] sm:$0xff]
    %v404 = vld [vmem:[%s5] sm:$0x3]
    %v406 = vlaneseq
    %v407 = vshrl.u32 %v406, 7
    %v408 = vsub.s32 0, %v407
    %v409 = vrot.slane %v404, %v408
    %v410 = vlaneseq
    %v411 = vshrl.u32 %v410, 7
    %v412 = vsub.s32 1, %v411
    %v413 = vrot.slane %v404, %v412
    %v448 = vunpack.c.l.b16 %v372
    %v449 = vunpack.c.h.b16 %v372
    %v450 = vunpack.c.l.b16 %v373
    %v451 = vunpack.c.h.b16 %v373
    %v452 = vunpack.c.l.b16 %v374
    %v453 = vunpack.c.h.b16 %v374
    %v454 = vunpack.c.l.b16 %v375
    %v455 = vunpack.c.h.b16 %v375
    %v456 = vunpack.c.l.b16 %v376
    %v457 = vunpack.c.h.b16 %v376
    %v458 = vunpack.c.l.b16 %v377
    %v459 = vunpack.c.h.b16 %v377
    %v460 = vunpack.c.l.b16 %v378
    %v461 = vunpack.c.h.b16 %v378
    %v462 = vunpack.c.l.b16 %v379
    %v463 = vunpack.c.h.b16 %v379
    %v464 = vunpack.c.l.b16 %v380
    %v465 = vunpack.c.h.b16 %v380
    %v466 = vunpack.c.l.b16 %v381
    %v467 = vunpack.c.h.b16 %v381
    %v468 = vunpack.c.l.b16 %v382
    %v469 = vunpack.c.h.b16 %v382
    %v470 = vunpack.c.l.b16 %v383
    %v471 = vunpack.c.h.b16 %v383
    %v472 = vunpack.c.l.b16 %v384
    %v473 = vunpack.c.h.b16 %v384
    %v474 = vunpack.c.l.b16 %v385
    %v475 = vunpack.c.h.b16 %v385
    %v476 = vunpack.c.l.b16 %v386
    %v477 = vunpack.c.h.b16 %v386
    %v478 = vunpack.c.l.b16 %v387
    %v479 = vunpack.c.h.b16 %v387
    %v480 = vunpack.c.l.b16 %v388
    %v481 = vunpack.c.h.b16 %v388
    %v482 = vunpack.c.l.b16 %v389
    %v483 = vunpack.c.h.b16 %v389
    %v484 = vunpack.c.l.b16 %v390
    %v485 = vunpack.c.h.b16 %v390
    %v486 = vunpack.c.l.b16 %v391
    %v487 = vunpack.c.h.b16 %v391
    %v488 = vunpack.c.l.b16 %v392
    %v489 = vunpack.c.h.b16 %v392
    %v490 = vunpack.c.l.b16 %v393
    %v491 = vunpack.c.h.b16 %v393
    %v492 = vunpack.c.l.b16 %v394
    %v493 = vunpack.c.h.b16 %v394
    %v494 = vunpack.c.l.b16 %v395
    %v495 = vunpack.c.h.b16 %v395
    %v496 = vunpack.c.l.b16 %v396
    %v497 = vunpack.c.h.b16 %v396
    %v498 = vunpack.c.l.b16 %v397
    %v499 = vunpack.c.h.b16 %v397
    %v500 = vunpack.c.l.b16 %v398
    %v501 = vunpack.c.h.b16 %v398
    %v502 = vunpack.c.l.b16 %v399
    %v503 = vunpack.c.h.b16 %v399
    %v504 = vunpack.c.l.b16 %v400
    %v505 = vunpack.c.h.b16 %v400
    %v506 = vunpack.c.l.b16 %v401
    %v507 = vunpack.c.h.b16 %v401
    %v508 = vunpack.c.l.b16 %v402
    %v509 = vunpack.c.h.b16 %v402
    %v510 = vunpack.c.l.b16 %v403
    %v511 = vunpack.c.h.b16 %v403
    %v512 = vpack.c.b16 %v450, %v448
    %v513 = vpack.c.b16 %v451, %v449
    %v514 = vpack.c.b16 %v454, %v452
    %v515 = vpack.c.b16 %v455, %v453
    %v516 = vpack.c.b16 %v458, %v456
    %v517 = vpack.c.b16 %v459, %v457
    %v518 = vpack.c.b16 %v462, %v460
    %v519 = vpack.c.b16 %v463, %v461
    %v520 = vpack.c.b16 %v466, %v464
    %v521 = vpack.c.b16 %v467, %v465
    %v522 = vpack.c.b16 %v470, %v468
    %v523 = vpack.c.b16 %v471, %v469
    %v524 = vpack.c.b16 %v474, %v472
    %v525 = vpack.c.b16 %v475, %v473
    %v526 = vpack.c.b16 %v478, %v476
    %v527 = vpack.c.b16 %v479, %v477
    %v528 = vpack.c.b16 %v482, %v480
    %v529 = vpack.c.b16 %v483, %v481
    %v530 = vpack.c.b16 %v486, %v484
    %v531 = vpack.c.b16 %v487, %v485
    %v532 = vpack.c.b16 %v490, %v488
    %v533 = vpack.c.b16 %v491, %v489
    %v534 = vpack.c.b16 %v494, %v492
    %v535 = vpack.c.b16 %v495, %v493
    %v536 = vpack.c.b16 %v498, %v496
    %v537 = vpack.c.b16 %v499, %v497
    %v538 = vpack.c.b16 %v502, %v500
    %v539 = vpack.c.b16 %v503, %v501
    %v540 = vpack.c.b16 %v506, %v504
    %v541 = vpack.c.b16 %v507, %v505
    %v542 = vpack.c.b16 %v510, %v508
    %v543 = vpack.c.b16 %v511, %v509
    %576 = vmatprep.subr.bf16.mxu0 %v527
    %577 = vmatpush1.bf16.msra.mxu0 %v526
    %578 = vmatprep.subr.bf16.mxu0 %v525
    %579 = vmatpush1.bf16.msra.mxu0 %v524
    %580 = vmatprep.subr.bf16.mxu0 %v523
    %581 = vmatpush1.bf16.msra.mxu0 %v522
    %582 = vmatprep.subr.bf16.mxu0 %v521
    %583 = vmatpush1.bf16.msra.mxu0 %v520
    %584 = vmatprep.subr.bf16.mxu0 %v519
    %585 = vmatpush1.bf16.msra.mxu0 %v518
    %586 = vmatprep.subr.bf16.mxu0 %v517
    %587 = vmatpush1.bf16.msra.mxu0 %v516
    %588 = vmatprep.subr.bf16.mxu0 %v515
    %589 = vmatpush1.bf16.msra.mxu0 %v514
    %590 = vmatprep.subr.bf16.mxu0 %v513
    %591 = vmatpush1.bf16.msra.mxu0 %v512
    %592 = vmatprep.subr.bf16.mxu0 %v543
    %593 = vmatpush2.bf16.msra.mxu0 %v542
    %594 = vmatprep.subr.bf16.mxu0 %v541
    %595 = vmatpush2.bf16.msra.mxu0 %v540
    %596 = vmatprep.subr.bf16.mxu0 %v539
    %597 = vmatpush2.bf16.msra.mxu0 %v538
    %598 = vmatprep.subr.bf16.mxu0 %v537
    %599 = vmatpush2.bf16.msra.mxu0 %v536
    %600 = vmatprep.subr.bf16.mxu0 %v535
    %601 = vmatpush2.bf16.msra.mxu0 %v534
    %602 = vmatprep.subr.bf16.mxu0 %v533
    %603 = vmatpush2.bf16.msra.mxu0 %v532
    %604 = vmatprep.subr.bf16.mxu0 %v531
    %605 = vmatpush2.bf16.msra.mxu0 %v530
    %606 = vmatprep.subr.bf16.mxu0 %v529
    %607 = vmatpush2.bf16.msra.mxu0 %v528
    %608 = vmatprep.mubr.bf16.mxu0 %v371
    %609 = vmatmul.mubr.bf16.gmra.mxu0 %v370
    %v610 = vpop.f32.mrf.mxu0
    %v611 = vadd.f32 %v409, %v610
    %v612 = vpop.f32.mrf.mxu0
    %v613 = vadd.f32 %v413, %v612
    %v614 = vpop.f32.mrf.mxu0
    %v615 = vpop.f32.mrf.mxu0
    %616 = vdwg.mxu0
    %617 = vst [vmem:[#allocation14] sm:$0xff] %v611
    %618 = vst [vmem:[#allocation14 + $0x8] sm:$0xff] %v613
    %v619 = vld [vmem:[#allocation5] sm:$0xff]
    %v620 = vmul.f32 %v613, 1.442695
    %v621 = vpow.pop %v620
    %v622 = vmul.f32 %v619, %v621
    %v623 = vadd.f32 %v622, %v611
    %624 = vst [vmem:[#allocation16] sm:$0xff] %v623
    %v625 = vpack.c.bf16 %v623, %v623
    %v626 = vld [vmem:[#allocation10] sm:$0xff]
    %v627 = vld [vmem:[#allocation10 + $0x8] sm:$0xff]
    %v628 = vld [vmem:[#allocation10 + $0x10] sm:$0xff]
    %v629 = vld [vmem:[#allocation10 + $0x18] sm:$0xff]
    %v630 = vld [vmem:[#allocation10 + $0x20] sm:$0xff]
    %v631 = vld [vmem:[#allocation10 + $0x28] sm:$0xff]
    %v632 = vld [vmem:[#allocation10 + $0x30] sm:$0xff]
    %v633 = vld [vmem:[#allocation10 + $0x38] sm:$0xff]
    %v634 = vld [vmem:[#allocation10 + $0x40] sm:$0xff]
    %v635 = vld [vmem:[#allocation10 + $0x48] sm:$0xff]
    %v636 = vld [vmem:[#allocation10 + $0x50] sm:$0xff]
    %v637 = vld [vmem:[#allocation10 + $0x58] sm:$0xff]
    %v638 = vld [vmem:[#allocation10 + $0x60] sm:$0xff]
    %v639 = vld [vmem:[#allocation10 + $0x68] sm:$0xff]
    %v640 = vld [vmem:[#allocation10 + $0x70] sm:$0xff]
    %v641 = vld [vmem:[#allocation10 + $0x78] sm:$0xff]
    %v642 = vld [vmem:[%s7] sm:$0x3]
    %v644 = vlaneseq
    %v645 = vshrl.u32 %v644, 7
    %v646 = vsub.s32 0, %v645
    %v647 = vrot.slane %v642, %v646
    %v648 = vlaneseq
    %v649 = vshrl.u32 %v648, 7
    %v650 = vsub.s32 1, %v649
    %v651 = vrot.slane %v642, %v650
    %v670 = vunpack.c.l.b16 %v626
    %v671 = vunpack.c.h.b16 %v626
    %v672 = vunpack.c.l.b16 %v627
    %v673 = vunpack.c.h.b16 %v627
    %v674 = vunpack.c.l.b16 %v628
    %v675 = vunpack.c.h.b16 %v628
    %v676 = vunpack.c.l.b16 %v629
    %v677 = vunpack.c.h.b16 %v629
    %v678 = vunpack.c.l.b16 %v630
    %v679 = vunpack.c.h.b16 %v630
    %v680 = vunpack.c.l.b16 %v631
    %v681 = vunpack.c.h.b16 %v631
    %v682 = vunpack.c.l.b16 %v632
    %v683 = vunpack.c.h.b16 %v632
    %v684 = vunpack.c.l.b16 %v633
    %v685 = vunpack.c.h.b16 %v633
    %v686 = vunpack.c.l.b16 %v634
    %v687 = vunpack.c.h.b16 %v634
    %v688 = vunpack.c.l.b16 %v635
    %v689 = vunpack.c.h.b16 %v635
    %v690 = vunpack.c.l.b16 %v636
    %v691 = vunpack.c.h.b16 %v636
    %v692 = vunpack.c.l.b16 %v637
    %v693 = vunpack.c.h.b16 %v637
    %v694 = vunpack.c.l.b16 %v638
    %v695 = vunpack.c.h.b16 %v638
    %v696 = vunpack.c.l.b16 %v639
    %v697 = vunpack.c.h.b16 %v639
    %v698 = vunpack.c.l.b16 %v640
    %v699 = vunpack.c.h.b16 %v640
    %v700 = vunpack.c.l.b16 %v641
    %v701 = vunpack.c.h.b16 %v641
    %v702 = vpack.c.b16 %v672, %v670
    %v703 = vpack.c.b16 %v673, %v671
    %v704 = vpack.c.b16 %v676, %v674
    %v705 = vpack.c.b16 %v677, %v675
    %v706 = vpack.c.b16 %v680, %v678
    %v707 = vpack.c.b16 %v681, %v679
    %v708 = vpack.c.b16 %v684, %v682
    %v709 = vpack.c.b16 %v685, %v683
    %v710 = vpack.c.b16 %v688, %v686
    %v711 = vpack.c.b16 %v689, %v687
    %v712 = vpack.c.b16 %v692, %v690
    %v713 = vpack.c.b16 %v693, %v691
    %v714 = vpack.c.b16 %v696, %v694
    %v715 = vpack.c.b16 %v697, %v695
    %v716 = vpack.c.b16 %v700, %v698
    %v717 = vpack.c.b16 %v701, %v699
    %734 = vmatprep.subr.bf16.mxu0 %v717
    %735 = vmatpush1.bf16.msra.mxu0 %v716
    %736 = vmatprep.subr.bf16.mxu0 %v715
    %737 = vmatpush1.bf16.msra.mxu0 %v714
    %738 = vmatprep.subr.bf16.mxu0 %v713
    %739 = vmatpush1.bf16.msra.mxu0 %v712
    %740 = vmatprep.subr.bf16.mxu0 %v711
    %741 = vmatpush1.bf16.msra.mxu0 %v710
    %742 = vmatprep.subr.bf16.mxu0 %v709
    %743 = vmatpush1.bf16.msra.mxu0 %v708
    %744 = vmatprep.subr.bf16.mxu0 %v707
    %745 = vmatpush1.bf16.msra.mxu0 %v706
    %746 = vmatprep.subr.bf16.mxu0 %v705
    %747 = vmatpush1.bf16.msra.mxu0 %v704
    %748 = vmatprep.subr.bf16.mxu0 %v703
    %749 = vmatpush1.bf16.msra.mxu0 %v702
    %750 = vmatprep.subr.bf16.mxu0 0
    %751 = vmatpush2.bf16.msra.mxu0 0
    %752 = vmatprep.subr.bf16.mxu0 0
    %753 = vmatpush2.bf16.msra.mxu0 0
    %754 = vmatprep.subr.bf16.mxu0 0
    %755 = vmatpush2.bf16.msra.mxu0 0
    %756 = vmatprep.subr.bf16.mxu0 0
    %757 = vmatpush2.bf16.msra.mxu0 0
    %758 = vmatprep.subr.bf16.mxu0 0
    %759 = vmatpush2.bf16.msra.mxu0 0
    %760 = vmatprep.subr.bf16.mxu0 0
    %761 = vmatpush2.bf16.msra.mxu0 0
    %762 = vmatprep.subr.bf16.mxu0 0
    %763 = vmatpush2.bf16.msra.mxu0 0
    %764 = vmatprep.subr.bf16.mxu0 0
    %765 = vmatpush2.bf16.msra.mxu0 0
    %766 = vmatprep.mubr.bf16.mxu0 0
    %767 = vmatmul.mubr.bf16.gmra.mxu0 %v625
    %v768 = vpop.f32.mrf.mxu0
    %v769 = vadd.f32 %v647, %v768
    %v770 = vpop.f32.mrf.mxu0
    %v771 = vadd.f32 %v651, %v770
    %v772 = vpop.f32.mrf.mxu0
    %v773 = vpop.f32.mrf.mxu0
    %774 = vdwg.mxu0
    %v775 = vtanh.pop %v769
    %v776 = vtanh.pop %v771
    %v777 = vpack.c.bf16 %v775, %v775
    %v778 = vpack.c.bf16 %v776, %v776
    %v779 = vld [vmem:[#allocation11] sm:$0xff]
    %v780 = vld [vmem:[#allocation11 + $0x8] sm:$0xff]
    %v781 = vld [vmem:[#allocation11 + $0x10] sm:$0xff]
    %v782 = vld [vmem:[#allocation11 + $0x18] sm:$0xff]
    %v783 = vld [vmem:[#allocation11 + $0x20] sm:$0xff]
    %v784 = vld [vmem:[#allocation11 + $0x28] sm:$0xff]
    %v785 = vld [vmem:[#allocation11 + $0x30] sm:$0xff]
    %v786 = vld [vmem:[#allocation11 + $0x38] sm:$0xff]
    %v787 = vld [vmem:[#allocation11 + $0x40] sm:$0xff]
    %v788 = vld [vmem:[#allocation11 + $0x48] sm:$0xff]
    %v789 = vld [vmem:[#allocation11 + $0x50] sm:$0xff]
    %v790 = vld [vmem:[#allocation11 + $0x58] sm:$0xff]
    %v791 = vld [vmem:[#allocation11 + $0x60] sm:$0xff]
    %v792 = vld [vmem:[#allocation11 + $0x68] sm:$0xff]
    %v793 = vld [vmem:[#allocation11 + $0x70] sm:$0xff]
    %v794 = vld [vmem:[#allocation11 + $0x78] sm:$0xff]
    %v795 = vld [vmem:[#allocation11 + $0x80] sm:$0xff]
    %v796 = vld [vmem:[#allocation11 + $0x88] sm:$0xff]
    %v797 = vld [vmem:[#allocation11 + $0x90] sm:$0xff]
    %v798 = vld [vmem:[#allocation11 + $0x98] sm:$0xff]
    %v799 = vld [vmem:[#allocation11 + $0xa0] sm:$0xff]
    %v800 = vld [vmem:[#allocation11 + $0xa8] sm:$0xff]
    %v801 = vld [vmem:[#allocation11 + $0xb0] sm:$0xff]
    %v802 = vld [vmem:[#allocation11 + $0xb8] sm:$0xff]
    %v803 = vld [vmem:[#allocation11 + $0xc0] sm:$0xff]
    %v804 = vld [vmem:[#allocation11 + $0xc8] sm:$0xff]
    %v805 = vld [vmem:[#allocation11 + $0xd0] sm:$0xff]
    %v806 = vld [vmem:[#allocation11 + $0xd8] sm:$0xff]
    %v807 = vld [vmem:[#allocation11 + $0xe0] sm:$0xff]
    %v808 = vld [vmem:[#allocation11 + $0xe8] sm:$0xff]
    %v809 = vld [vmem:[#allocation11 + $0xf0] sm:$0xff]
    %v810 = vld [vmem:[#allocation11 + $0xf8] sm:$0xff]
    %v811 = vld [vmem:[%s9] sm:$0x3]
    %v813 = vlaneseq
    %v814 = vshrl.u32 %v813, 7
    %v815 = vsub.s32 0, %v814
    %v816 = vrot.slane %v811, %v815
    %v817 = vlaneseq
    %v818 = vshrl.u32 %v817, 7
    %v819 = vsub.s32 1, %v818
    %v820 = vrot.slane %v811, %v819
    %v855 = vunpack.c.l.b16 %v779
    %v856 = vunpack.c.h.b16 %v779
    %v857 = vunpack.c.l.b16 %v780
    %v858 = vunpack.c.h.b16 %v780
    %v859 = vunpack.c.l.b16 %v781
    %v860 = vunpack.c.h.b16 %v781
    %v861 = vunpack.c.l.b16 %v782
    %v862 = vunpack.c.h.b16 %v782
    %v863 = vunpack.c.l.b16 %v783
    %v864 = vunpack.c.h.b16 %v783
    %v865 = vunpack.c.l.b16 %v784
    %v866 = vunpack.c.h.b16 %v784
    %v867 = vunpack.c.l.b16 %v785
    %v868 = vunpack.c.h.b16 %v785
    %v869 = vunpack.c.l.b16 %v786
    %v870 = vunpack.c.h.b16 %v786
    %v871 = vunpack.c.l.b16 %v787
    %v872 = vunpack.c.h.b16 %v787
    %v873 = vunpack.c.l.b16 %v788
    %v874 = vunpack.c.h.b16 %v788
    %v875 = vunpack.c.l.b16 %v789
    %v876 = vunpack.c.h.b16 %v789
    %v877 = vunpack.c.l.b16 %v790
    %v878 = vunpack.c.h.b16 %v790
    %v879 = vunpack.c.l.b16 %v791
    %v880 = vunpack.c.h.b16 %v791
    %v881 = vunpack.c.l.b16 %v792
    %v882 = vunpack.c.h.b16 %v792
    %v883 = vunpack.c.l.b16 %v793
    %v884 = vunpack.c.h.b16 %v793
    %v885 = vunpack.c.l.b16 %v794
    %v886 = vunpack.c.h.b16 %v794
    %v887 = vunpack.c.l.b16 %v795
    %v888 = vunpack.c.h.b16 %v795
    %v889 = vunpack.c.l.b16 %v796
    %v890 = vunpack.c.h.b16 %v796
    %v891 = vunpack.c.l.b16 %v797
    %v892 = vunpack.c.h.b16 %v797
    %v893 = vunpack.c.l.b16 %v798
    %v894 = vunpack.c.h.b16 %v798
    %v895 = vunpack.c.l.b16 %v799
    %v896 = vunpack.c.h.b16 %v799
    %v897 = vunpack.c.l.b16 %v800
    %v898 = vunpack.c.h.b16 %v800
    %v899 = vunpack.c.l.b16 %v801
    %v900 = vunpack.c.h.b16 %v801
    %v901 = vunpack.c.l.b16 %v802
    %v902 = vunpack.c.h.b16 %v802
    %v903 = vunpack.c.l.b16 %v803
    %v904 = vunpack.c.h.b16 %v803
    %v905 = vunpack.c.l.b16 %v804
    %v906 = vunpack.c.h.b16 %v804
    %v907 = vunpack.c.l.b16 %v805
    %v908 = vunpack.c.h.b16 %v805
    %v909 = vunpack.c.l.b16 %v806
    %v910 = vunpack.c.h.b16 %v806
    %v911 = vunpack.c.l.b16 %v807
    %v912 = vunpack.c.h.b16 %v807
    %v913 = vunpack.c.l.b16 %v808
    %v914 = vunpack.c.h.b16 %v808
    %v915 = vunpack.c.l.b16 %v809
    %v916 = vunpack.c.h.b16 %v809
    %v917 = vunpack.c.l.b16 %v810
    %v918 = vunpack.c.h.b16 %v810
    %v919 = vpack.c.b16 %v857, %v855
    %v920 = vpack.c.b16 %v858, %v856
    %v921 = vpack.c.b16 %v861, %v859
    %v922 = vpack.c.b16 %v862, %v860
    %v923 = vpack.c.b16 %v865, %v863
    %v924 = vpack.c.b16 %v866, %v864
    %v925 = vpack.c.b16 %v869, %v867
    %v926 = vpack.c.b16 %v870, %v868
    %v927 = vpack.c.b16 %v873, %v871
    %v928 = vpack.c.b16 %v874, %v872
    %v929 = vpack.c.b16 %v877, %v875
    %v930 = vpack.c.b16 %v878, %v876
    %v931 = vpack.c.b16 %v881, %v879
    %v932 = vpack.c.b16 %v882, %v880
    %v933 = vpack.c.b16 %v885, %v883
    %v934 = vpack.c.b16 %v886, %v884
    %v935 = vpack.c.b16 %v889, %v887
    %v936 = vpack.c.b16 %v890, %v888
    %v937 = vpack.c.b16 %v893, %v891
    %v938 = vpack.c.b16 %v894, %v892
    %v939 = vpack.c.b16 %v897, %v895
    %v940 = vpack.c.b16 %v898, %v896
    %v941 = vpack.c.b16 %v901, %v899
    %v942 = vpack.c.b16 %v902, %v900
    %v943 = vpack.c.b16 %v905, %v903
    %v944 = vpack.c.b16 %v906, %v904
    %v945 = vpack.c.b16 %v909, %v907
    %v946 = vpack.c.b16 %v910, %v908
    %v947 = vpack.c.b16 %v913, %v911
    %v948 = vpack.c.b16 %v914, %v912
    %v949 = vpack.c.b16 %v917, %v915
    %v950 = vpack.c.b16 %v918, %v916
    %983 = vmatprep.subr.bf16.mxu0 %v934
    %984 = vmatpush1.bf16.msra.mxu0 %v933
    %985 = vmatprep.subr.bf16.mxu0 %v932
    %986 = vmatpush1.bf16.msra.mxu0 %v931
    %987 = vmatprep.subr.bf16.mxu0 %v930
    %988 = vmatpush1.bf16.msra.mxu0 %v929
    %989 = vmatprep.subr.bf16.mxu0 %v928
    %990 = vmatpush1.bf16.msra.mxu0 %v927
    %991 = vmatprep.subr.bf16.mxu0 %v926
    %992 = vmatpush1.bf16.msra.mxu0 %v925
    %993 = vmatprep.subr.bf16.mxu0 %v924
    %994 = vmatpush1.bf16.msra.mxu0 %v923
    %995 = vmatprep.subr.bf16.mxu0 %v922
    %996 = vmatpush1.bf16.msra.mxu0 %v921
    %997 = vmatprep.subr.bf16.mxu0 %v920
    %998 = vmatpush1.bf16.msra.mxu0 %v919
    %999 = vmatprep.subr.bf16.mxu0 %v950
    %1000 = vmatpush2.bf16.msra.mxu0 %v949
    %1001 = vmatprep.subr.bf16.mxu0 %v948
    %1002 = vmatpush2.bf16.msra.mxu0 %v947
    %1003 = vmatprep.subr.bf16.mxu0 %v946
    %1004 = vmatpush2.bf16.msra.mxu0 %v945
    %1005 = vmatprep.subr.bf16.mxu0 %v944
    %1006 = vmatpush2.bf16.msra.mxu0 %v943
    %1007 = vmatprep.subr.bf16.mxu0 %v942
    %1008 = vmatpush2.bf16.msra.mxu0 %v941
    %1009 = vmatprep.subr.bf16.mxu0 %v940
    %1010 = vmatpush2.bf16.msra.mxu0 %v939
    %1011 = vmatprep.subr.bf16.mxu0 %v938
    %1012 = vmatpush2.bf16.msra.mxu0 %v937
    %1013 = vmatprep.subr.bf16.mxu0 %v936
    %1014 = vmatpush2.bf16.msra.mxu0 %v935
    %1015 = vmatprep.mubr.bf16.mxu0 %v778
    %1016 = vmatmul.mubr.bf16.gmra.mxu0 %v777
    %v1017 = vpop.f32.mrf.mxu0
    %v1018 = vadd.f32 %v816, %v1017
    %v1019 = vpop.f32.mrf.mxu0
    %v1020 = vadd.f32 %v820, %v1019
    %v1021 = vpop.f32.mrf.mxu0
    %v1022 = vpop.f32.mrf.mxu0
    %1023 = vdwg.mxu0
    %v1024 = vmul.f32 %v1018, 0.5
    %v1025 = vmul.f32 %v1020, 0.5
    %v1026 = vtanh.pop %v1024
    %v1027 = vtanh.pop %v1025
    %v1028 = vadd.f32 %v1026, 1.0
    %v1029 = vadd.f32 %v1027, 1.0
    %v1030 = vmul.f32 %v1028, 0.5
    %v1031 = vmul.f32 %v1029, 0.5
    %1032 = vst [vmem:[#allocation13] sm:$0xff] %v1030
    %1033 = vst [vmem:[#allocation13 + $0x8] sm:$0xff] %v1031
    // Predicated region
    $region66: #{tpu_custom_call.1} parent=1 // pred_check
      _
    $region67: #{tpu_custom_call.1} parent=1 // pred_check_branch
      %1035 = sbr.rel (0) target = $region69
    $region68: #{tpu_custom_call.1} parent=1 // pred_region
      %s1037 = ssub.s32 256, 256
      %1038 = vsyncadd [#allocation4], %s1037
      %s1040 = sshll.u32 [#allocation13], 4
      %s1041 = int_to_ptr.vmem [resolvable:$true] %s1040
      %1043 = dma.vmem_to_hbm [thread:$0]  %s1041, 256, %s10, [#allocation4]
    $region69: #{tpu_custom_call.1} parent=1 // pred_fallthru
      _
    // Predicated region
    $region70: #{tpu_custom_call.1} parent=1 // pred_check
      _
    $region71: #{tpu_custom_call.1} parent=1 // pred_check_branch
      %1045 = sbr.rel (0) target = $region73
    $region72: #{tpu_custom_call.1} parent=1 // pred_region
      %s1047 = ssub.s32 256, 256
      %1048 = vsyncadd [#allocation15], %s1047
      %s1050 = sshll.u32 [#allocation14], 4
      %s1051 = int_to_ptr.vmem [resolvable:$true] %s1050
      %1053 = dma.vmem_to_hbm [thread:$0]  %s1051, 256, %s11, [#allocation15]
    $region73: #{tpu_custom_call.1} parent=1 // pred_fallthru
      _
    // Predicated region
    $region74: #{tpu_custom_call.1} parent=1 // pred_check
      _
    $region75: #{tpu_custom_call.1} parent=1 // pred_check_branch
      %1055 = sbr.rel (0) target = $region77
    $region76: #{tpu_custom_call.1} parent=1 // pred_region
      %s1057 = ssub.s32 128, 128
      %1058 = vsyncadd [#allocation15], %s1057
      %s1060 = sshll.u32 [#allocation16], 4
      %s1061 = int_to_ptr.vmem [resolvable:$true] %s1060
      %1063 = dma.vmem_to_hbm [thread:$0]  %s1061, 128, %s12, [#allocation15]
    $region77: #{tpu_custom_call.1} parent=1 // pred_fallthru
      _
    // Predicated region
    $region78: #{tpu_custom_call.1} parent=1 // pred_check
      _
    $region79: #{tpu_custom_call.1} parent=1 // pred_check_branch
      %1065 = sbr.rel (0) target = $region81
    $region80: #{tpu_custom_call.1} parent=1 // pred_region
      %1066 = dma.done [#allocation4], 256
    $region81: #{tpu_custom_call.1} parent=1 // pred_fallthru
      _
    // Predicated region
    $region82: #{tpu_custom_call.1} parent=1 // pred_check
      _
    $region83: #{tpu_custom_call.1} parent=1 // pred_check_branch
      %1068 = sbr.rel (0) target = $region85
    $region84: #{tpu_custom_call.1} parent=1 // pred_region
      %1069 = dma.done [#allocation15], 256
    $region85: #{tpu_custom_call.1} parent=1 // pred_fallthru
      _
    // Predicated region
    $region86: #{tpu_custom_call.1} parent=1 // pred_check
      _
    $region87: #{tpu_custom_call.1} parent=1 // pred_check_branch
      %1071 = sbr.rel (0) target = $region89
    $region88: #{tpu_custom_call.1} parent=1 // pred_region
      %1072 = dma.done [#allocation15], 128
    $region89: #{tpu_custom_call.1} parent=1 // pred_fallthru
      _
    %1073 = vsyncpa [#allocation3], 1
    %1074 = vsyncpa [#allocation6], 1
    %1075 = vsyncpa [#allocation9], 1
    %1076 = vsyncpa [#allocation12], 1
    %1077 = vsyncpa [#allocation4], 1
    %1078 = vsyncpa [#allocation15], 1

</llo_original>
